<compile_context>
chip_gen: v6e
topology: v6e:2x2x1
jax: 0.10.0
libtpu: 0.0.40
codegen_flags: <defaults>
</compile_context>

<pallas_src>
import jax
import jax.numpy as jnp
from jax.experimental import pallas as pl
from jax.experimental.pallas import tpu as pltpu


def _newdp_kernel(r_ref, d_ref, i_ref, o_ref):
    # Block shape: (bb, tc, HW) — channels on sublanes, spatial on lanes.
    # Compute in f32 regardless of I/O dtype (bf16 inputs supported).
    r = r_ref[...].astype(jnp.float32)
    d = d_ref[...].astype(jnp.float32)
    i = i_ref[...].astype(jnp.float32)

    # AdaptiveAvgPool2d(1) / AdaptiveMaxPool2d(1): the spatial axis is fully
    # resident in the block (HW is never tiled), so the mean divides by the
    # true H*W and the max needs no -inf masking.
    a = jnp.mean(i, axis=-1, keepdims=True)   # (bb, tc, 1)
    b = jnp.max(i, axis=-1, keepdims=True)    # (bb, tc, 1)

    # s = sigmoid(a*r + b*d); res = r*s + d*s == (r + d) * s  (saves one VPU mul)
    s = jax.nn.sigmoid(a * r + b * d)
    o_ref[...] = ((r + d) * s).astype(o_ref.dtype)


def _round_up(x, m):
    return -(-x // m) * m


def _divisors_desc(n):
    return [v for v in range(n, 0, -1) if n % v == 0]


def _num_tensorcores():
    """Best-effort TensorCore count (2 on v7x, 1 on v5e/v6e)."""
    try:
        info = pltpu.get_tpu_info()
        for attr in ("num_cores", "core_count", "num_tensorcores",
                     "tensorcores_per_chip", "cores_per_chip"):
            v = getattr(info, attr, None)
            if isinstance(v, int) and 0 < v <= 8:
                return v
    except Exception:
        pass
    try:
        kind = jax.devices()[0].device_kind.lower()
        if "7" in kind:          # "TPU7x" / "TPU v7x"
            return 2
    except Exception:
        pass
    return 1                      # v5e / v6e: single TC, grid is a serial loop


def _vmem_budget_and_limit():
    """(per-step working-set budget, vmem_limit_bytes) per generation."""
    try:
        cap = pltpu.get_tpu_info().vmem_capacity_bytes
    except Exception:
        cap = 64 * 1024 * 1024                      # conservative (v7x-sized)
    if cap >= 96 * 1024 * 1024:                     # v5e / v6e: 128 MiB physical
        return 48 * 1024 * 1024, 96 * 1024 * 1024
    else:                                           # v7x: 64 MiB physical
        return 24 * 1024 * 1024, 40 * 1024 * 1024


def _plan_blocks(B, C, HW, itemsize, n_cores, budget):
    """Pick (batch_block, channel_block) so the 4-array double-buffered,
    lane/sublane-padded footprint fits `budget`; on multi-TC chips guarantee
    >= n_cores grid blocks (split channels first — the reduction is HW-only)."""
    hw_pad = _round_up(HW, 128)

    def footprint(bb, tc):
        return 4 * 2 * bb * _round_up(tc, 8) * hw_pad * itemsize

    # Candidate channel tiles: full C, or divisors of C that are multiples of 8
    # (satisfies the (8,128) sublane constraint for the second-to-last dim).
    c_tiles = [t for t in _divisors_desc(C) if t == C or t % 8 == 0]
    if not c_tiles:
        c_tiles = [C]

    best = None   # (bb, tc, num_blocks)
    for tc in c_tiles:
        for bb in _divisors_desc(B):
            if footprint(bb, tc) <= budget:
                blocks = (B // bb) * (C // tc)
                if best is None or blocks < best[2]:
                    best = (bb, tc, blocks)
                break   # largest feasible bb for this tc
    if best is None:
        # TODO(synk): HW-tiling (two-pass pooling) fallback for feature maps so
        # large that even a single channel-tile block exceeds the budget; never
        # triggers for newdp's stage-4 shapes (C<=512, HW<=64*64).
        tc = c_tiles[-1]
        best = (1, tc, B * (C // tc))
    bb, tc, nblocks = best

    if n_cores > 1 and nblocks < n_cores:
        # Prefer splitting channels (free w.r.t. the HW reduction).
        smaller_c = [t for t in c_tiles if t < tc]
        done = False
        for tc2 in smaller_c:
            if (B // bb) * (C // tc2) >= n_cores and footprint(bb, tc2) <= budget:
                tc = tc2
                done = True
                break
        if not done:
            for bb2 in [v for v in _divisors_desc(B) if v < bb]:
                if (B // bb2) * (C // tc) >= n_cores:
                    bb = bb2
                    break
    return bb, tc


def newdp_pallas(r, d, i):
    """Pallas implementation of newdp.forward.

    r, d, i: (B, C, H, W) float32 or bfloat16 (NCHW).  No layout transposes:
    NCHW is contiguous, so the (B, C, H*W) view is a zero-cost reshape.
    """
    assert r.shape == d.shape == i.shape
    assert r.dtype == d.dtype == i.dtype
    B, C, H, W = r.shape
    HW = H * W

    r2 = r.reshape(B, C, HW)
    d2 = d.reshape(B, C, HW)
    i2 = i.reshape(B, C, HW)

    n_cores = _num_tensorcores()
    budget, vmem_limit = _vmem_budget_and_limit()
    bb, tc = _plan_blocks(B, C, HW, r.dtype.itemsize, n_cores, budget)

    # Last block dim equals the full HW extent (so the (8,128) rule is met even
    # when HW < 128); channel tile is a multiple of 8 or the full C.
    spec = pl.BlockSpec((bb, tc, HW), lambda b, c: (b, c, 0))

    out = pl.pallas_call(
        _newdp_kernel,
        out_shape=jax.ShapeDtypeStruct((B, C, HW), r.dtype),
        grid=(B // bb, C // tc),
        in_specs=[spec, spec, spec],
        out_specs=spec,
        compiler_params=pltpu.CompilerParams(
            dimension_semantics=("parallel", "parallel"),
            vmem_limit_bytes=vmem_limit,
        ),
    )(r2, d2, i2)

    return out.reshape(B, C, H, W)


def newdp_reference(r, d, i):
    """Pure-JAX reference matching the PyTorch semantics."""
    a = jnp.mean(i, axis=(2, 3), keepdims=True)
    b = jnp.max(i, axis=(2, 3), keepdims=True)
    s = jax.nn.sigmoid(a * r + b * d)
    return r * s + d * s


def init_newdp_params(in_planes=512, out_planes=512, kernel_size=3):
    """Deterministic init of the (unused-in-forward) conv weight, for module parity."""
    key = jax.random.PRNGKey(42)
    w = jax.random.normal(
        key, (out_planes, in_planes, kernel_size, kernel_size), dtype=jnp.float32
    ) * 0.02
    return {"conv_weight": w}


if __name__ == "__main__":
    # Shapes consistent with Me's usage: newdp is applied to the deepest
    # (stage-4) feature maps — channel-heavy, spatially small NCHW tensors.
    B, C, H, W = 2, 128, 8, 8

    key = jax.random.PRNGKey(0)
    kr, kd, ki = jax.random.split(key, 3)
    r = jax.random.normal(kr, (B, C, H, W), dtype=jnp.float32)
    d = jax.random.normal(kd, (B, C, H, W), dtype=jnp.float32)
    i = jax.random.normal(ki, (B, C, H, W), dtype=jnp.float32)

    _ = init_newdp_params(in_planes=C, out_planes=C, kernel_size=3)  # unused in forward

    # f32 path
    out = jax.block_until_ready(newdp_pallas(r, d, i))
    ref = newdp_reference(r, d, i)
    assert out.shape == (B, C, H, W)
    assert jnp.allclose(out, ref, atol=1e-5, rtol=1e-5), "Pallas kernel mismatch vs reference (f32)"

    # bf16 I/O path (halves HBM bytes for this memory-bound op; math in f32 in-kernel)
    rb, db, ib = (t.astype(jnp.bfloat16) for t in (r, d, i))
    out_bf = jax.block_until_ready(newdp_pallas(rb, db, ib))
    ref_bf = newdp_reference(rb.astype(jnp.float32), db.astype(jnp.float32), ib.astype(jnp.float32))
    assert out_bf.dtype == jnp.bfloat16
    assert jnp.allclose(out_bf.astype(jnp.float32), ref_bf, atol=1e-1, rtol=1e-1), \
        "Pallas kernel mismatch vs reference (bf16)"

    print("KERNEL_OK")
</pallas_src>

<mosaic_0001>
module attributes {stable_mosaic.version = 11 : i64} {
  func.func @_newdp_kernel(%arg0: i32, %arg1: i32, %arg2: memref<2x128x64xf32, #tpu.memory_space<vmem>>, %arg3: memref<2x128x64xf32, #tpu.memory_space<vmem>>, %arg4: memref<2x128x64xf32, #tpu.memory_space<vmem>>, %arg5: memref<2x128x64xf32, #tpu.memory_space<vmem>>) attributes {dimension_semantics = [#tpu.dimension_semantics<parallel>, #tpu.dimension_semantics<parallel>], iteration_bounds = array<i64: 1, 1>, scalar_prefetch = 0 : i64, scratch_operands = 0 : i64, tpu.core_type = #tpu.core_type<tc>, window_params = [{transform_indices = @transform_0, window_bounds = array<i64: 2, 128, 64>}, {transform_indices = @transform_1, window_bounds = array<i64: 2, 128, 64>}, {transform_indices = @transform_2, window_bounds = array<i64: 2, 128, 64>}, {transform_indices = @transform_3, window_bounds = array<i64: 2, 128, 64>}]} {
    %c0 = arith.constant 0 : index
    %c0_0 = arith.constant 0 : index
    %c0_1 = arith.constant 0 : index
    %0 = vector.load %arg2[%c0, %c0_0, %c0_1] : memref<2x128x64xf32, #tpu.memory_space<vmem>>, vector<2x128x64xf32>
    %c0_2 = arith.constant 0 : index
    %c0_3 = arith.constant 0 : index
    %c0_4 = arith.constant 0 : index
    %1 = vector.load %arg3[%c0_2, %c0_3, %c0_4] : memref<2x128x64xf32, #tpu.memory_space<vmem>>, vector<2x128x64xf32>
    %c0_5 = arith.constant 0 : index
    %c0_6 = arith.constant 0 : index
    %c0_7 = arith.constant 0 : index
    %2 = vector.load %arg4[%c0_5, %c0_6, %c0_7] : memref<2x128x64xf32, #tpu.memory_space<vmem>>, vector<2x128x64xf32>
    %cst = arith.constant dense<0.000000e+00> : vector<2x128xf32>
    %3 = vector.multi_reduction <add>, %2, %cst [2] : vector<2x128x64xf32> to vector<2x128xf32>
    %4 = vector.shape_cast %3 : vector<2x128xf32> to vector<2x128x1xf32>
    %cst_8 = arith.constant 6.400000e+01 : f32
    %5 = vector.broadcast %cst_8 : f32 to vector<2x128x1xf32>
    %6 = arith.divf %4, %5 : vector<2x128x1xf32>
    %cst_9 = arith.constant dense<0xFF800000> : vector<2x128xf32>
    %7 = vector.multi_reduction <maximumf>, %2, %cst_9 [2] : vector<2x128x64xf32> to vector<2x128xf32>
    %8 = vector.shape_cast %7 : vector<2x128xf32> to vector<2x128x1xf32>
    %9 = vector.broadcast %6 : vector<2x128x1xf32> to vector<2x128x64xf32>
    %10 = arith.mulf %9, %0 : vector<2x128x64xf32>
    %11 = vector.broadcast %8 : vector<2x128x1xf32> to vector<2x128x64xf32>
    %12 = arith.mulf %11, %1 : vector<2x128x64xf32>
    %13 = arith.addf %10, %12 : vector<2x128x64xf32>
    %14 = arith.negf %13 : vector<2x128x64xf32>
    %15 = math.exp %14 : vector<2x128x64xf32>
    %cst_10 = arith.constant 1.000000e+00 : f32
    %16 = vector.broadcast %cst_10 : f32 to vector<2x128x64xf32>
    %17 = arith.addf %16, %15 : vector<2x128x64xf32>
    %18 = arith.divf %16, %17 : vector<2x128x64xf32>
    %19 = arith.addf %0, %1 : vector<2x128x64xf32>
    %20 = arith.mulf %19, %18 : vector<2x128x64xf32>
    %c0_11 = arith.constant 0 : index
    %c0_12 = arith.constant 0 : index
    %c0_13 = arith.constant 0 : index
    %21 = vector.load %arg5[%c0_11, %c0_12, %c0_13] : memref<2x128x64xf32, #tpu.memory_space<vmem>>, vector<2x128x64xf32>
    tpu.vector_store %arg5[%c0_11, %c0_12, %c0_13], %20 {strides = array<i32>} : memref<2x128x64xf32, #tpu.memory_space<vmem>>, vector<2x128x64xf32>,
    return
  }
  func.func @transform_0(%arg0: i32, %arg1: i32) -> (i32, i32, i32) {
    %c0_i32 = arith.constant 0 : i32
    %c0_i32_0 = arith.constant 0 : i32
    return %arg0, %arg1, %c0_i32 : i32, i32, i32
  }
  func.func @transform_1(%arg0: i32, %arg1: i32) -> (i32, i32, i32) {
    %c0_i32 = arith.constant 0 : i32
    %c0_i32_0 = arith.constant 0 : i32
    return %arg0, %arg1, %c0_i32 : i32, i32, i32
  }
  func.func @transform_2(%arg0: i32, %arg1: i32) -> (i32, i32, i32) {
    %c0_i32 = arith.constant 0 : i32
    %c0_i32_0 = arith.constant 0 : i32
    return %arg0, %arg1, %c0_i32 : i32, i32, i32
  }
  func.func @transform_3(%arg0: i32, %arg1: i32) -> (i32, i32, i32) {
    %c0_i32 = arith.constant 0 : i32
    %c0_i32_0 = arith.constant 0 : i32
    return %arg0, %arg1, %c0_i32 : i32, i32, i32
  }
}

</mosaic_0001>

<llo_original>
// kernel: tpu_custom_call.1
$region0: #{tpu_custom_call.1}
  #allocation0 [shape = 'u32[]', space=smem, size = 0x4, offset = 0x4, fixed_abs, tag = 'smem constant byte address 0x4 - core index']
  #allocation1 [shape = 'u32[144,128]{1,0:T(1,128)}', space=vmem, size = 0x12000, scoped, tag = 'internal scratch']
  %s0 = inlined_call_operand.vmem [shape: f32[2,128,64], index: 0, kind: input, shape index: {}]
  %s1 = inlined_call_operand.vmem [shape: f32[2,128,64], index: 1, kind: input, shape index: {}]
  %s2 = inlined_call_operand.vmem [shape: f32[2,128,64], index: 2, kind: input, shape index: {}]
  %s3 = inlined_call_operand.vmem [shape: f32[2,128,64], index: 3, kind: output, shape index: {}]
  %s4 = sld [smem:[#allocation0]]
  $region22: #{tpu_custom_call.1} parent=0
    _
  %s6 = ssub.s32 1, %s4
  %s7 = scalar_select 0, %s6, %s4
  // Predicated region
  $region2: #{tpu_custom_call.1} parent=0 // pred_check
    _
  $region3: #{tpu_custom_call.1} parent=0 // pred_check_branch
    %9 = sbr.rel (0) target = $region5
  $region4: #{tpu_custom_call.1} parent=0 // pred_region
    _
  $region5: #{tpu_custom_call.1} parent=0 // pred_fallthru
    _
  // Predicated region
  $region6: #{tpu_custom_call.1} parent=0 // pred_check
    _
  $region7: #{tpu_custom_call.1} parent=0 // pred_check_branch
    %11 = sbr.rel (0) target = $region9
  $region8: #{tpu_custom_call.1} parent=0 // pred_region
    _
  $region9: #{tpu_custom_call.1} parent=0 // pred_fallthru
    _
  // Predicated region
  $region10: #{tpu_custom_call.1} parent=0 // pred_check
    _
  $region11: #{tpu_custom_call.1} parent=0 // pred_check_branch
    %13 = sbr.rel (0) target = $region13
  $region12: #{tpu_custom_call.1} parent=0 // pred_region
    _
  $region13: #{tpu_custom_call.1} parent=0 // pred_fallthru
    _
  %v14 = vld [vmem:[%s0] sm:$0xff]
  %v15 = vld [vmem:[%s0 + $0x8] sm:$0xff]
  %v16 = vld [vmem:[%s0 + $0x10] sm:$0xff]
  %v17 = vld [vmem:[%s0 + $0x18] sm:$0xff]
  %v18 = vld [vmem:[%s0 + $0x20] sm:$0xff]
  %v19 = vld [vmem:[%s0 + $0x28] sm:$0xff]
  %v20 = vld [vmem:[%s0 + $0x30] sm:$0xff]
  %v21 = vld [vmem:[%s0 + $0x38] sm:$0xff]
  %v22 = vld [vmem:[%s0 + $0x40] sm:$0xff]
  %v23 = vld [vmem:[%s0 + $0x48] sm:$0xff]
  %v24 = vld [vmem:[%s0 + $0x50] sm:$0xff]
  %v25 = vld [vmem:[%s0 + $0x58] sm:$0xff]
  %v26 = vld [vmem:[%s0 + $0x60] sm:$0xff]
  %v27 = vld [vmem:[%s0 + $0x68] sm:$0xff]
  %v28 = vld [vmem:[%s0 + $0x70] sm:$0xff]
  %v29 = vld [vmem:[%s0 + $0x78] sm:$0xff]
  %v30 = vld [vmem:[%s0 + $0x80] sm:$0xff]
  %v31 = vld [vmem:[%s0 + $0x88] sm:$0xff]
  %v32 = vld [vmem:[%s0 + $0x90] sm:$0xff]
  %v33 = vld [vmem:[%s0 + $0x98] sm:$0xff]
  %v34 = vld [vmem:[%s0 + $0xa0] sm:$0xff]
  %v35 = vld [vmem:[%s0 + $0xa8] sm:$0xff]
  %v36 = vld [vmem:[%s0 + $0xb0] sm:$0xff]
  %v37 = vld [vmem:[%s0 + $0xb8] sm:$0xff]
  %v38 = vld [vmem:[%s0 + $0xc0] sm:$0xff]
  %v39 = vld [vmem:[%s0 + $0xc8] sm:$0xff]
  %v40 = vld [vmem:[%s0 + $0xd0] sm:$0xff]
  %v41 = vld [vmem:[%s0 + $0xd8] sm:$0xff]
  %v42 = vld [vmem:[%s0 + $0xe0] sm:$0xff]
  %v43 = vld [vmem:[%s0 + $0xe8] sm:$0xff]
  %v44 = vld [vmem:[%s0 + $0xf0] sm:$0xff]
  %v45 = vld [vmem:[%s0 + $0xf8] sm:$0xff]
  %v46 = vld [vmem:[%s1] sm:$0xff]
  %v47 = vld [vmem:[%s1 + $0x8] sm:$0xff]
  %v48 = vld [vmem:[%s1 + $0x10] sm:$0xff]
  %v49 = vld [vmem:[%s1 + $0x18] sm:$0xff]
  %v50 = vld [vmem:[%s1 + $0x20] sm:$0xff]
  %v51 = vld [vmem:[%s1 + $0x28] sm:$0xff]
  %v52 = vld [vmem:[%s1 + $0x30] sm:$0xff]
  %v53 = vld [vmem:[%s1 + $0x38] sm:$0xff]
  %v54 = vld [vmem:[%s1 + $0x40] sm:$0xff]
  %v55 = vld [vmem:[%s1 + $0x48] sm:$0xff]
  %v56 = vld [vmem:[%s1 + $0x50] sm:$0xff]
  %v57 = vld [vmem:[%s1 + $0x58] sm:$0xff]
  %v58 = vld [vmem:[%s1 + $0x60] sm:$0xff]
  %v59 = vld [vmem:[%s1 + $0x68] sm:$0xff]
  %v60 = vld [vmem:[%s1 + $0x70] sm:$0xff]
  %v61 = vld [vmem:[%s1 + $0x78] sm:$0xff]
  %v62 = vld [vmem:[%s1 + $0x80] sm:$0xff]
  %v63 = vld [vmem:[%s1 + $0x88] sm:$0xff]
  %v64 = vld [vmem:[%s1 + $0x90] sm:$0xff]
  %v65 = vld [vmem:[%s1 + $0x98] sm:$0xff]
  %v66 = vld [vmem:[%s1 + $0xa0] sm:$0xff]
  %v67 = vld [vmem:[%s1 + $0xa8] sm:$0xff]
  %v68 = vld [vmem:[%s1 + $0xb0] sm:$0xff]
  %v69 = vld [vmem:[%s1 + $0xb8] sm:$0xff]
  %v70 = vld [vmem:[%s1 + $0xc0] sm:$0xff]
  %v71 = vld [vmem:[%s1 + $0xc8] sm:$0xff]
  %v72 = vld [vmem:[%s1 + $0xd0] sm:$0xff]
  %v73 = vld [vmem:[%s1 + $0xd8] sm:$0xff]
  %v74 = vld [vmem:[%s1 + $0xe0] sm:$0xff]
  %v75 = vld [vmem:[%s1 + $0xe8] sm:$0xff]
  %v76 = vld [vmem:[%s1 + $0xf0] sm:$0xff]
  %v77 = vld [vmem:[%s1 + $0xf8] sm:$0xff]
  %v78 = vld [vmem:[%s2] sm:$0xff]
  %v79 = vld [vmem:[%s2 + $0x8] sm:$0xff]
  %v80 = vld [vmem:[%s2 + $0x10] sm:$0xff]
  %v81 = vld [vmem:[%s2 + $0x18] sm:$0xff]
  %v82 = vld [vmem:[%s2 + $0x20] sm:$0xff]
  %v83 = vld [vmem:[%s2 + $0x28] sm:$0xff]
  %v84 = vld [vmem:[%s2 + $0x30] sm:$0xff]
  %v85 = vld [vmem:[%s2 + $0x38] sm:$0xff]
  %v86 = vld [vmem:[%s2 + $0x40] sm:$0xff]
  %v87 = vld [vmem:[%s2 + $0x48] sm:$0xff]
  %v88 = vld [vmem:[%s2 + $0x50] sm:$0xff]
  %v89 = vld [vmem:[%s2 + $0x58] sm:$0xff]
  %v90 = vld [vmem:[%s2 + $0x60] sm:$0xff]
  %v91 = vld [vmem:[%s2 + $0x68] sm:$0xff]
  %v92 = vld [vmem:[%s2 + $0x70] sm:$0xff]
  %v93 = vld [vmem:[%s2 + $0x78] sm:$0xff]
  %v94 = vld [vmem:[%s2 + $0x80] sm:$0xff]
  %v95 = vld [vmem:[%s2 + $0x88] sm:$0xff]
  %v96 = vld [vmem:[%s2 + $0x90] sm:$0xff]
  %v97 = vld [vmem:[%s2 + $0x98] sm:$0xff]
  %v98 = vld [vmem:[%s2 + $0xa0] sm:$0xff]
  %v99 = vld [vmem:[%s2 + $0xa8] sm:$0xff]
  %v100 = vld [vmem:[%s2 + $0xb0] sm:$0xff]
  %v101 = vld [vmem:[%s2 + $0xb8] sm:$0xff]
  %v102 = vld [vmem:[%s2 + $0xc0] sm:$0xff]
  %v103 = vld [vmem:[%s2 + $0xc8] sm:$0xff]
  %v104 = vld [vmem:[%s2 + $0xd0] sm:$0xff]
  %v105 = vld [vmem:[%s2 + $0xd8] sm:$0xff]
  %v106 = vld [vmem:[%s2 + $0xe0] sm:$0xff]
  %v107 = vld [vmem:[%s2 + $0xe8] sm:$0xff]
  %v108 = vld [vmem:[%s2 + $0xf0] sm:$0xff]
  %v109 = vld [vmem:[%s2 + $0xf8] sm:$0xff]
  %vm110 = vcmask 523264
  %v111 = vsel %vm110, %v78, 0.0
  %112 = vadd.xlane.f32.xlu0 %v111
  %v113 = vpop.xlane.xlu0 %112
  %v114 = vsel %vm110, %v79, 0.0
  %115 = vadd.xlane.f32.xlu0 %v114
  %v116 = vpop.xlane.xlu0 %115
  %v117 = vsel %vm110, %v80, 0.0
  %118 = vadd.xlane.f32.xlu0 %v117
  %v119 = vpop.xlane.xlu0 %118
  %v120 = vsel %vm110, %v81, 0.0
  %121 = vadd.xlane.f32.xlu0 %v120
  %v122 = vpop.xlane.xlu0 %121
  %v123 = vsel %vm110, %v82, 0.0
  %124 = vadd.xlane.f32.xlu0 %v123
  %v125 = vpop.xlane.xlu0 %124
  %v126 = vsel %vm110, %v83, 0.0
  %127 = vadd.xlane.f32.xlu0 %v126
  %v128 = vpop.xlane.xlu0 %127
  %v129 = vsel %vm110, %v84, 0.0
  %130 = vadd.xlane.f32.xlu0 %v129
  %v131 = vpop.xlane.xlu0 %130
  %v132 = vsel %vm110, %v85, 0.0
  %133 = vadd.xlane.f32.xlu0 %v132
  %v134 = vpop.xlane.xlu0 %133
  %v135 = vsel %vm110, %v86, 0.0
  %136 = vadd.xlane.f32.xlu0 %v135
  %v137 = vpop.xlane.xlu0 %136
  %v138 = vsel %vm110, %v87, 0.0
  %139 = vadd.xlane.f32.xlu0 %v138
  %v140 = vpop.xlane.xlu0 %139
  %v141 = vsel %vm110, %v88, 0.0
  %142 = vadd.xlane.f32.xlu0 %v141
  %v143 = vpop.xlane.xlu0 %142
  %v144 = vsel %vm110, %v89, 0.0
  %145 = vadd.xlane.f32.xlu0 %v144
  %v146 = vpop.xlane.xlu0 %145
  %v147 = vsel %vm110, %v90, 0.0
  %148 = vadd.xlane.f32.xlu0 %v147
  %v149 = vpop.xlane.xlu0 %148
  %v150 = vsel %vm110, %v91, 0.0
  %151 = vadd.xlane.f32.xlu0 %v150
  %v152 = vpop.xlane.xlu0 %151
  %v153 = vsel %vm110, %v92, 0.0
  %154 = vadd.xlane.f32.xlu0 %v153
  %v155 = vpop.xlane.xlu0 %154
  %v156 = vsel %vm110, %v93, 0.0
  %157 = vadd.xlane.f32.xlu0 %v156
  %v158 = vpop.xlane.xlu0 %157
  %v159 = vsel %vm110, %v94, 0.0
  %160 = vadd.xlane.f32.xlu0 %v159
  %v161 = vpop.xlane.xlu0 %160
  %v162 = vsel %vm110, %v95, 0.0
  %163 = vadd.xlane.f32.xlu0 %v162
  %v164 = vpop.xlane.xlu0 %163
  %v165 = vsel %vm110, %v96, 0.0
  %166 = vadd.xlane.f32.xlu0 %v165
  %v167 = vpop.xlane.xlu0 %166
  %v168 = vsel %vm110, %v97, 0.0
  %169 = vadd.xlane.f32.xlu0 %v168
  %v170 = vpop.xlane.xlu0 %169
  %v171 = vsel %vm110, %v98, 0.0
  %172 = vadd.xlane.f32.xlu0 %v171
  %v173 = vpop.xlane.xlu0 %172
  %v174 = vsel %vm110, %v99, 0.0
  %175 = vadd.xlane.f32.xlu0 %v174
  %v176 = vpop.xlane.xlu0 %175
  %v177 = vsel %vm110, %v100, 0.0
  %178 = vadd.xlane.f32.xlu0 %v177
  %v179 = vpop.xlane.xlu0 %178
  %v180 = vsel %vm110, %v101, 0.0
  %181 = vadd.xlane.f32.xlu0 %v180
  %v182 = vpop.xlane.xlu0 %181
  %v183 = vsel %vm110, %v102, 0.0
  %184 = vadd.xlane.f32.xlu0 %v183
  %v185 = vpop.xlane.xlu0 %184
  %v186 = vsel %vm110, %v103, 0.0
  %187 = vadd.xlane.f32.xlu0 %v186
  %v188 = vpop.xlane.xlu0 %187
  %v189 = vsel %vm110, %v104, 0.0
  %190 = vadd.xlane.f32.xlu0 %v189
  %v191 = vpop.xlane.xlu0 %190
  %v192 = vsel %vm110, %v105, 0.0
  %193 = vadd.xlane.f32.xlu0 %v192
  %v194 = vpop.xlane.xlu0 %193
  %v195 = vsel %vm110, %v106, 0.0
  %196 = vadd.xlane.f32.xlu0 %v195
  %v197 = vpop.xlane.xlu0 %196
  %v198 = vsel %vm110, %v107, 0.0
  %199 = vadd.xlane.f32.xlu0 %v198
  %v200 = vpop.xlane.xlu0 %199
  %v201 = vsel %vm110, %v108, 0.0
  %202 = vadd.xlane.f32.xlu0 %v201
  %v203 = vpop.xlane.xlu0 %202
  %v204 = vsel %vm110, %v109, 0.0
  %205 = vadd.xlane.f32.xlu0 %v204
  %v206 = vpop.xlane.xlu0 %205
  %v207 = vrcp.pop 64.0
  %v208 = vmul.f32 %v113, %v207
  %v209 = vmul.f32 %v116, %v207
  %v210 = vmul.f32 %v119, %v207
  %v211 = vmul.f32 %v122, %v207
  %v212 = vmul.f32 %v125, %v207
  %v213 = vmul.f32 %v128, %v207
  %v214 = vmul.f32 %v131, %v207
  %v215 = vmul.f32 %v134, %v207
  %v216 = vmul.f32 %v137, %v207
  %v217 = vmul.f32 %v140, %v207
  %v218 = vmul.f32 %v143, %v207
  %v219 = vmul.f32 %v146, %v207
  %v220 = vmul.f32 %v149, %v207
  %v221 = vmul.f32 %v152, %v207
  %v222 = vmul.f32 %v155, %v207
  %v223 = vmul.f32 %v158, %v207
  %v224 = vmul.f32 %v161, %v207
  %v225 = vmul.f32 %v164, %v207
  %v226 = vmul.f32 %v167, %v207
  %v227 = vmul.f32 %v170, %v207
  %v228 = vmul.f32 %v173, %v207
  %v229 = vmul.f32 %v176, %v207
  %v230 = vmul.f32 %v179, %v207
  %v231 = vmul.f32 %v182, %v207
  %v232 = vmul.f32 %v185, %v207
  %v233 = vmul.f32 %v188, %v207
  %v234 = vmul.f32 %v191, %v207
  %v235 = vmul.f32 %v194, %v207
  %v236 = vmul.f32 %v197, %v207
  %v237 = vmul.f32 %v200, %v207
  %v238 = vmul.f32 %v203, %v207
  %v239 = vmul.f32 %v206, %v207
  %v240 = vsel %vm110, %v78, -inf
  %241 = vmax.xlane.f32.xlu0 %v240
  %v242 = vpop.xlane.xlu0 %241
  %v243 = vsel %vm110, %v79, -inf
  %244 = vmax.xlane.f32.xlu0 %v243
  %v245 = vpop.xlane.xlu0 %244
  %v246 = vsel %vm110, %v80, -inf
  %247 = vmax.xlane.f32.xlu0 %v246
  %v248 = vpop.xlane.xlu0 %247
  %v249 = vsel %vm110, %v81, -inf
  %250 = vmax.xlane.f32.xlu0 %v249
  %v251 = vpop.xlane.xlu0 %250
  %v252 = vsel %vm110, %v82, -inf
  %253 = vmax.xlane.f32.xlu0 %v252
  %v254 = vpop.xlane.xlu0 %253
  %v255 = vsel %vm110, %v83, -inf
  %256 = vmax.xlane.f32.xlu0 %v255
  %v257 = vpop.xlane.xlu0 %256
  %v258 = vsel %vm110, %v84, -inf
  %259 = vmax.xlane.f32.xlu0 %v258
  %v260 = vpop.xlane.xlu0 %259
  %v261 = vsel %vm110, %v85, -inf
  %262 = vmax.xlane.f32.xlu0 %v261
  %v263 = vpop.xlane.xlu0 %262
  %v264 = vsel %vm110, %v86, -inf
  %265 = vmax.xlane.f32.xlu0 %v264
  %v266 = vpop.xlane.xlu0 %265
  %v267 = vsel %vm110, %v87, -inf
  %268 = vmax.xlane.f32.xlu0 %v267
  %v269 = vpop.xlane.xlu0 %268
  %v270 = vsel %vm110, %v88, -inf
  %271 = vmax.xlane.f32.xlu0 %v270
  %v272 = vpop.xlane.xlu0 %271
  %v273 = vsel %vm110, %v89, -inf
  %274 = vmax.xlane.f32.xlu0 %v273
  %v275 = vpop.xlane.xlu0 %274
  %v276 = vsel %vm110, %v90, -inf
  %277 = vmax.xlane.f32.xlu0 %v276
  %v278 = vpop.xlane.xlu0 %277
  %v279 = vsel %vm110, %v91, -inf
  %280 = vmax.xlane.f32.xlu0 %v279
  %v281 = vpop.xlane.xlu0 %280
  %v282 = vsel %vm110, %v92, -inf
  %283 = vmax.xlane.f32.xlu0 %v282
  %v284 = vpop.xlane.xlu0 %283
  %v285 = vsel %vm110, %v93, -inf
  %286 = vmax.xlane.f32.xlu0 %v285
  %v287 = vpop.xlane.xlu0 %286
  %v288 = vsel %vm110, %v94, -inf
  %289 = vmax.xlane.f32.xlu0 %v288
  %v290 = vpop.xlane.xlu0 %289
  %v291 = vsel %vm110, %v95, -inf
  %292 = vmax.xlane.f32.xlu0 %v291
  %v293 = vpop.xlane.xlu0 %292
  %v294 = vsel %vm110, %v96, -inf
  %295 = vmax.xlane.f32.xlu0 %v294
  %v296 = vpop.xlane.xlu0 %295
  %v297 = vsel %vm110, %v97, -inf
  %298 = vmax.xlane.f32.xlu0 %v297
  %v299 = vpop.xlane.xlu0 %298
  %v300 = vsel %vm110, %v98, -inf
  %301 = vmax.xlane.f32.xlu0 %v300
  %v302 = vpop.xlane.xlu0 %301
  %v303 = vsel %vm110, %v99, -inf
  %304 = vmax.xlane.f32.xlu0 %v303
  %v305 = vpop.xlane.xlu0 %304
  %v306 = vsel %vm110, %v100, -inf
  %307 = vmax.xlane.f32.xlu0 %v306
  %v308 = vpop.xlane.xlu0 %307
  %v309 = vsel %vm110, %v101, -inf
  %310 = vmax.xlane.f32.xlu0 %v309
  %v311 = vpop.xlane.xlu0 %310
  %v312 = vsel %vm110, %v102, -inf
  %313 = vmax.xlane.f32.xlu0 %v312
  %v314 = vpop.xlane.xlu0 %313
  %v315 = vsel %vm110, %v103, -inf
  %316 = vmax.xlane.f32.xlu0 %v315
  %v317 = vpop.xlane.xlu0 %316
  %v318 = vsel %vm110, %v104, -inf
  %319 = vmax.xlane.f32.xlu0 %v318
  %v320 = vpop.xlane.xlu0 %319
  %v321 = vsel %vm110, %v105, -inf
  %322 = vmax.xlane.f32.xlu0 %v321
  %v323 = vpop.xlane.xlu0 %322
  %v324 = vsel %vm110, %v106, -inf
  %325 = vmax.xlane.f32.xlu0 %v324
  %v326 = vpop.xlane.xlu0 %325
  %v327 = vsel %vm110, %v107, -inf
  %328 = vmax.xlane.f32.xlu0 %v327
  %v329 = vpop.xlane.xlu0 %328
  %v330 = vsel %vm110, %v108, -inf
  %331 = vmax.xlane.f32.xlu0 %v330
  %v332 = vpop.xlane.xlu0 %331
  %v333 = vsel %vm110, %v109, -inf
  %334 = vmax.xlane.f32.xlu0 %v333
  %v335 = vpop.xlane.xlu0 %334
  %v336 = vmul.f32 %v208, %v14
  %v337 = vmul.f32 %v209, %v15
  %v338 = vmul.f32 %v210, %v16
  %v339 = vmul.f32 %v211, %v17
  %v340 = vmul.f32 %v212, %v18
  %v341 = vmul.f32 %v213, %v19
  %v342 = vmul.f32 %v214, %v20
  %v343 = vmul.f32 %v215, %v21
  %v344 = vmul.f32 %v216, %v22
  %v345 = vmul.f32 %v217, %v23
  %v346 = vmul.f32 %v218, %v24
  %v347 = vmul.f32 %v219, %v25
  %v348 = vmul.f32 %v220, %v26
  %v349 = vmul.f32 %v221, %v27
  %v350 = vmul.f32 %v222, %v28
  %v351 = vmul.f32 %v223, %v29
  %v352 = vmul.f32 %v224, %v30
  %v353 = vmul.f32 %v225, %v31
  %v354 = vmul.f32 %v226, %v32
  %v355 = vmul.f32 %v227, %v33
  %v356 = vmul.f32 %v228, %v34
  %v357 = vmul.f32 %v229, %v35
  %v358 = vmul.f32 %v230, %v36
  %v359 = vmul.f32 %v231, %v37
  %v360 = vmul.f32 %v232, %v38
  %v361 = vmul.f32 %v233, %v39
  %v362 = vmul.f32 %v234, %v40
  %v363 = vmul.f32 %v235, %v41
  %v364 = vmul.f32 %v236, %v42
  %v365 = vmul.f32 %v237, %v43
  %v366 = vmul.f32 %v238, %v44
  %v367 = vmul.f32 %v239, %v45
  %v368 = vmul.f32 %v242, %v46
  %v369 = vmul.f32 %v245, %v47
  %v370 = vmul.f32 %v248, %v48
  %v371 = vmul.f32 %v251, %v49
  %v372 = vmul.f32 %v254, %v50
  %v373 = vmul.f32 %v257, %v51
  %v374 = vmul.f32 %v260, %v52
  %v375 = vmul.f32 %v263, %v53
  %v376 = vmul.f32 %v266, %v54
  %v377 = vmul.f32 %v269, %v55
  %v378 = vmul.f32 %v272, %v56
  %v379 = vmul.f32 %v275, %v57
  %v380 = vmul.f32 %v278, %v58
  %v381 = vmul.f32 %v281, %v59
  %v382 = vmul.f32 %v284, %v60
  %v383 = vmul.f32 %v287, %v61
  %v384 = vmul.f32 %v290, %v62
  %v385 = vmul.f32 %v293, %v63
  %v386 = vmul.f32 %v296, %v64
  %v387 = vmul.f32 %v299, %v65
  %v388 = vmul.f32 %v302, %v66
  %v389 = vmul.f32 %v305, %v67
  %v390 = vmul.f32 %v308, %v68
  %v391 = vmul.f32 %v311, %v69
  %v392 = vmul.f32 %v314, %v70
  %v393 = vmul.f32 %v317, %v71
  %v394 = vmul.f32 %v320, %v72
  %v395 = vmul.f32 %v323, %v73
  %v396 = vmul.f32 %v326, %v74
  %v397 = vmul.f32 %v329, %v75
  %v398 = vmul.f32 %v332, %v76
  %v399 = vmul.f32 %v335, %v77
  %v400 = vadd.f32 %v336, %v368
  %v401 = vadd.f32 %v337, %v369
  %v402 = vadd.f32 %v338, %v370
  %v403 = vadd.f32 %v339, %v371
  %v404 = vadd.f32 %v340, %v372
  %v405 = vadd.f32 %v341, %v373
  %v406 = vadd.f32 %v342, %v374
  %v407 = vadd.f32 %v343, %v375
  %v408 = vadd.f32 %v344, %v376
  %v409 = vadd.f32 %v345, %v377
  %v410 = vadd.f32 %v346, %v378
  %v411 = vadd.f32 %v347, %v379
  %v412 = vadd.f32 %v348, %v380
  %v413 = vadd.f32 %v349, %v381
  %v414 = vadd.f32 %v350, %v382
  %v415 = vadd.f32 %v351, %v383
  %v416 = vadd.f32 %v352, %v384
  %v417 = vadd.f32 %v353, %v385
  %v418 = vadd.f32 %v354, %v386
  %v419 = vadd.f32 %v355, %v387
  %v420 = vadd.f32 %v356, %v388
  %v421 = vadd.f32 %v357, %v389
  %v422 = vadd.f32 %v358, %v390
  %v423 = vadd.f32 %v359, %v391
  %v424 = vadd.f32 %v360, %v392
  %v425 = vadd.f32 %v361, %v393
  %v426 = vadd.f32 %v362, %v394
  %v427 = vadd.f32 %v363, %v395
  %v428 = vadd.f32 %v364, %v396
  %v429 = vadd.f32 %v365, %v397
  %v430 = vadd.f32 %v366, %v398
  %v431 = vadd.f32 %v367, %v399
  %v432 = vxor.u32 %v400, 2147483648
  %v433 = vxor.u32 %v401, 2147483648
  %v434 = vxor.u32 %v402, 2147483648
  %v435 = vxor.u32 %v403, 2147483648
  %v436 = vxor.u32 %v404, 2147483648
  %v437 = vxor.u32 %v405, 2147483648
  %v438 = vxor.u32 %v406, 2147483648
  %v439 = vxor.u32 %v407, 2147483648
  %v440 = vxor.u32 %v408, 2147483648
  %v441 = vxor.u32 %v409, 2147483648
  %v442 = vxor.u32 %v410, 2147483648
  %v443 = vxor.u32 %v411, 2147483648
  %v444 = vxor.u32 %v412, 2147483648
  %v445 = vxor.u32 %v413, 2147483648
  %v446 = vxor.u32 %v414, 2147483648
  %v447 = vxor.u32 %v415, 2147483648
  %v448 = vxor.u32 %v416, 2147483648
  %v449 = vxor.u32 %v417, 2147483648
  %v450 = vxor.u32 %v418, 2147483648
  %v451 = vxor.u32 %v419, 2147483648
  %v452 = vxor.u32 %v420, 2147483648
  %v453 = vxor.u32 %v421, 2147483648
  %v454 = vxor.u32 %v422, 2147483648
  %v455 = vxor.u32 %v423, 2147483648
  %v456 = vxor.u32 %v424, 2147483648
  %v457 = vxor.u32 %v425, 2147483648
  %v458 = vxor.u32 %v426, 2147483648
  %v459 = vxor.u32 %v427, 2147483648
  %v460 = vxor.u32 %v428, 2147483648
  %v461 = vxor.u32 %v429, 2147483648
  %v462 = vxor.u32 %v430, 2147483648
  %v463 = vxor.u32 %v431, 2147483648
  %v464 = vmul.f32 %v432, 1.442695
  %v465 = vpow.pop %v464
  %v466 = vmul.f32 %v433, 1.442695
  %v467 = vpow.pop %v466
  %v468 = vmul.f32 %v434, 1.442695
  %v469 = vpow.pop %v468
  %v470 = vmul.f32 %v435, 1.442695
  %v471 = vpow.pop %v470
  %v472 = vmul.f32 %v436, 1.442695
  %v473 = vpow.pop %v472
  %v474 = vmul.f32 %v437, 1.442695
  %v475 = vpow.pop %v474
  %v476 = vmul.f32 %v438, 1.442695
  %v477 = vpow.pop %v476
  %v478 = vmul.f32 %v439, 1.442695
  %v479 = vpow.pop %v478
  %v480 = vmul.f32 %v440, 1.442695
  %v481 = vpow.pop %v480
  %v482 = vmul.f32 %v441, 1.442695
  %v483 = vpow.pop %v482
  %v484 = vmul.f32 %v442, 1.442695
  %v485 = vpow.pop %v484
  %v486 = vmul.f32 %v443, 1.442695
  %v487 = vpow.pop %v486
  %v488 = vmul.f32 %v444, 1.442695
  %v489 = vpow.pop %v488
  %v490 = vmul.f32 %v445, 1.442695
  %v491 = vpow.pop %v490
  %v492 = vmul.f32 %v446, 1.442695
  %v493 = vpow.pop %v492
  %v494 = vmul.f32 %v447, 1.442695
  %v495 = vpow.pop %v494
  %v496 = vmul.f32 %v448, 1.442695
  %v497 = vpow.pop %v496
  %v498 = vmul.f32 %v449, 1.442695
  %v499 = vpow.pop %v498
  %v500 = vmul.f32 %v450, 1.442695
  %v501 = vpow.pop %v500
  %v502 = vmul.f32 %v451, 1.442695
  %v503 = vpow.pop %v502
  %v504 = vmul.f32 %v452, 1.442695
  %v505 = vpow.pop %v504
  %v506 = vmul.f32 %v453, 1.442695
  %v507 = vpow.pop %v506
  %v508 = vmul.f32 %v454, 1.442695
  %v509 = vpow.pop %v508
  %v510 = vmul.f32 %v455, 1.442695
  %v511 = vpow.pop %v510
  %v512 = vmul.f32 %v456, 1.442695
  %v513 = vpow.pop %v512
  %v514 = vmul.f32 %v457, 1.442695
  %v515 = vpow.pop %v514
  %v516 = vmul.f32 %v458, 1.442695
  %v517 = vpow.pop %v516
  %v518 = vmul.f32 %v459, 1.442695
  %v519 = vpow.pop %v518
  %v520 = vmul.f32 %v460, 1.442695
  %v521 = vpow.pop %v520
  %v522 = vmul.f32 %v461, 1.442695
  %v523 = vpow.pop %v522
  %v524 = vmul.f32 %v462, 1.442695
  %v525 = vpow.pop %v524
  %v526 = vmul.f32 %v463, 1.442695
  %v527 = vpow.pop %v526
  %v528 = vadd.f32 %v465, 1.0
  %v529 = vadd.f32 %v467, 1.0
  %v530 = vadd.f32 %v469, 1.0
  %v531 = vadd.f32 %v471, 1.0
  %v532 = vadd.f32 %v473, 1.0
  %v533 = vadd.f32 %v475, 1.0
  %v534 = vadd.f32 %v477, 1.0
  %v535 = vadd.f32 %v479, 1.0
  %v536 = vadd.f32 %v481, 1.0
  %v537 = vadd.f32 %v483, 1.0
  %v538 = vadd.f32 %v485, 1.0
  %v539 = vadd.f32 %v487, 1.0
  %v540 = vadd.f32 %v489, 1.0
  %v541 = vadd.f32 %v491, 1.0
  %v542 = vadd.f32 %v493, 1.0
  %v543 = vadd.f32 %v495, 1.0
  %v544 = vadd.f32 %v497, 1.0
  %v545 = vadd.f32 %v499, 1.0
  %v546 = vadd.f32 %v501, 1.0
  %v547 = vadd.f32 %v503, 1.0
  %v548 = vadd.f32 %v505, 1.0
  %v549 = vadd.f32 %v507, 1.0
  %v550 = vadd.f32 %v509, 1.0
  %v551 = vadd.f32 %v511, 1.0
  %v552 = vadd.f32 %v513, 1.0
  %v553 = vadd.f32 %v515, 1.0
  %v554 = vadd.f32 %v517, 1.0
  %v555 = vadd.f32 %v519, 1.0
  %v556 = vadd.f32 %v521, 1.0
  %v557 = vadd.f32 %v523, 1.0
  %v558 = vadd.f32 %v525, 1.0
  %v559 = vadd.f32 %v527, 1.0
  %v560 = vrcp.pop %v528
  %v561 = vmul.f32 1.0, %v560
  %v562 = vrcp.pop %v529
  %v563 = vmul.f32 1.0, %v562
  %v564 = vrcp.pop %v530
  %v565 = vmul.f32 1.0, %v564
  %v566 = vrcp.pop %v531
  %v567 = vmul.f32 1.0, %v566
  %v568 = vrcp.pop %v532
  %v569 = vmul.f32 1.0, %v568
  %v570 = vrcp.pop %v533
  %v571 = vmul.f32 1.0, %v570
  %v572 = vrcp.pop %v534
  %v573 = vmul.f32 1.0, %v572
  %v574 = vrcp.pop %v535
  %v575 = vmul.f32 1.0, %v574
  %v576 = vrcp.pop %v536
  %v577 = vmul.f32 1.0, %v576
  %v578 = vrcp.pop %v537
  %v579 = vmul.f32 1.0, %v578
  %v580 = vrcp.pop %v538
  %v581 = vmul.f32 1.0, %v580
  %v582 = vrcp.pop %v539
  %v583 = vmul.f32 1.0, %v582
  %v584 = vrcp.pop %v540
  %v585 = vmul.f32 1.0, %v584
  %v586 = vrcp.pop %v541
  %v587 = vmul.f32 1.0, %v586
  %v588 = vrcp.pop %v542
  %v589 = vmul.f32 1.0, %v588
  %v590 = vrcp.pop %v543
  %v591 = vmul.f32 1.0, %v590
  %v592 = vrcp.pop %v544
  %v593 = vmul.f32 1.0, %v592
  %v594 = vrcp.pop %v545
  %v595 = vmul.f32 1.0, %v594
  %v596 = vrcp.pop %v546
  %v597 = vmul.f32 1.0, %v596
  %v598 = vrcp.pop %v547
  %v599 = vmul.f32 1.0, %v598
  %v600 = vrcp.pop %v548
  %v601 = vmul.f32 1.0, %v600
  %v602 = vrcp.pop %v549
  %v603 = vmul.f32 1.0, %v602
  %v604 = vrcp.pop %v550
  %v605 = vmul.f32 1.0, %v604
  %v606 = vrcp.pop %v551
  %v607 = vmul.f32 1.0, %v606
  %v608 = vrcp.pop %v552
  %v609 = vmul.f32 1.0, %v608
  %v610 = vrcp.pop %v553
  %v611 = vmul.f32 1.0, %v610
  %v612 = vrcp.pop %v554
  %v613 = vmul.f32 1.0, %v612
  %v614 = vrcp.pop %v555
  %v615 = vmul.f32 1.0, %v614
  %v616 = vrcp.pop %v556
  %v617 = vmul.f32 1.0, %v616
  %v618 = vrcp.pop %v557
  %v619 = vmul.f32 1.0, %v618
  %v620 = vrcp.pop %v558
  %v621 = vmul.f32 1.0, %v620
  %v622 = vrcp.pop %v559
  %v623 = vmul.f32 1.0, %v622
  %v624 = vadd.f32 %v14, %v46
  %v625 = vadd.f32 %v15, %v47
  %v626 = vadd.f32 %v16, %v48
  %v627 = vadd.f32 %v17, %v49
  %v628 = vadd.f32 %v18, %v50
  %v629 = vadd.f32 %v19, %v51
  %v630 = vadd.f32 %v20, %v52
  %v631 = vadd.f32 %v21, %v53
  %v632 = vadd.f32 %v22, %v54
  %v633 = vadd.f32 %v23, %v55
  %v634 = vadd.f32 %v24, %v56
  %v635 = vadd.f32 %v25, %v57
  %v636 = vadd.f32 %v26, %v58
  %v637 = vadd.f32 %v27, %v59
  %v638 = vadd.f32 %v28, %v60
  %v639 = vadd.f32 %v29, %v61
  %v640 = vadd.f32 %v30, %v62
  %v641 = vadd.f32 %v31, %v63
  %v642 = vadd.f32 %v32, %v64
  %v643 = vadd.f32 %v33, %v65
  %v644 = vadd.f32 %v34, %v66
  %v645 = vadd.f32 %v35, %v67
  %v646 = vadd.f32 %v36, %v68
  %v647 = vadd.f32 %v37, %v69
  %v648 = vadd.f32 %v38, %v70
  %v649 = vadd.f32 %v39, %v71
  %v650 = vadd.f32 %v40, %v72
  %v651 = vadd.f32 %v41, %v73
  %v652 = vadd.f32 %v42, %v74
  %v653 = vadd.f32 %v43, %v75
  %v654 = vadd.f32 %v44, %v76
  %v655 = vadd.f32 %v45, %v77
  %v656 = vmul.f32 %v624, %v561
  %v657 = vmul.f32 %v625, %v563
  %v658 = vmul.f32 %v626, %v565
  %v659 = vmul.f32 %v627, %v567
  %v660 = vmul.f32 %v628, %v569
  %v661 = vmul.f32 %v629, %v571
  %v662 = vmul.f32 %v630, %v573
  %v663 = vmul.f32 %v631, %v575
  %v664 = vmul.f32 %v632, %v577
  %v665 = vmul.f32 %v633, %v579
  %v666 = vmul.f32 %v634, %v581
  %v667 = vmul.f32 %v635, %v583
  %v668 = vmul.f32 %v636, %v585
  %v669 = vmul.f32 %v637, %v587
  %v670 = vmul.f32 %v638, %v589
  %v671 = vmul.f32 %v639, %v591
  %v672 = vmul.f32 %v640, %v593
  %v673 = vmul.f32 %v641, %v595
  %v674 = vmul.f32 %v642, %v597
  %v675 = vmul.f32 %v643, %v599
  %v676 = vmul.f32 %v644, %v601
  %v677 = vmul.f32 %v645, %v603
  %v678 = vmul.f32 %v646, %v605
  %v679 = vmul.f32 %v647, %v607
  %v680 = vmul.f32 %v648, %v609
  %v681 = vmul.f32 %v649, %v611
  %v682 = vmul.f32 %v650, %v613
  %v683 = vmul.f32 %v651, %v615
  %v684 = vmul.f32 %v652, %v617
  %v685 = vmul.f32 %v653, %v619
  %v686 = vmul.f32 %v654, %v621
  %v687 = vmul.f32 %v655, %v623
  %688 = vst.msk [vmem:[%s3] sm:$0xff] %vm110, %v656
  %689 = vst.msk [vmem:[%s3 + $0x8] sm:$0xff] %vm110, %v657
  %690 = vst.msk [vmem:[%s3 + $0x10] sm:$0xff] %vm110, %v658
  %691 = vst.msk [vmem:[%s3 + $0x18] sm:$0xff] %vm110, %v659
  %692 = vst.msk [vmem:[%s3 + $0x20] sm:$0xff] %vm110, %v660
  %693 = vst.msk [vmem:[%s3 + $0x28] sm:$0xff] %vm110, %v661
  %694 = vst.msk [vmem:[%s3 + $0x30] sm:$0xff] %vm110, %v662
  %695 = vst.msk [vmem:[%s3 + $0x38] sm:$0xff] %vm110, %v663
  %696 = vst.msk [vmem:[%s3 + $0x40] sm:$0xff] %vm110, %v664
  %697 = vst.msk [vmem:[%s3 + $0x48] sm:$0xff] %vm110, %v665
  %698 = vst.msk [vmem:[%s3 + $0x50] sm:$0xff] %vm110, %v666
  %699 = vst.msk [vmem:[%s3 + $0x58] sm:$0xff] %vm110, %v667
  %700 = vst.msk [vmem:[%s3 + $0x60] sm:$0xff] %vm110, %v668
  %701 = vst.msk [vmem:[%s3 + $0x68] sm:$0xff] %vm110, %v669
  %702 = vst.msk [vmem:[%s3 + $0x70] sm:$0xff] %vm110, %v670
  %703 = vst.msk [vmem:[%s3 + $0x78] sm:$0xff] %vm110, %v671
  %704 = vst.msk [vmem:[%s3 + $0x80] sm:$0xff] %vm110, %v672
  %705 = vst.msk [vmem:[%s3 + $0x88] sm:$0xff] %vm110, %v673
  %706 = vst.msk [vmem:[%s3 + $0x90] sm:$0xff] %vm110, %v674
  %707 = vst.msk [vmem:[%s3 + $0x98] sm:$0xff] %vm110, %v675
  %708 = vst.msk [vmem:[%s3 + $0xa0] sm:$0xff] %vm110, %v676
  %709 = vst.msk [vmem:[%s3 + $0xa8] sm:$0xff] %vm110, %v677
  %710 = vst.msk [vmem:[%s3 + $0xb0] sm:$0xff] %vm110, %v678
  %711 = vst.msk [vmem:[%s3 + $0xb8] sm:$0xff] %vm110, %v679
  %712 = vst.msk [vmem:[%s3 + $0xc0] sm:$0xff] %vm110, %v680
  %713 = vst.msk [vmem:[%s3 + $0xc8] sm:$0xff] %vm110, %v681
  %714 = vst.msk [vmem:[%s3 + $0xd0] sm:$0xff] %vm110, %v682
  %715 = vst.msk [vmem:[%s3 + $0xd8] sm:$0xff] %vm110, %v683
  %716 = vst.msk [vmem:[%s3 + $0xe0] sm:$0xff] %vm110, %v684
  %717 = vst.msk [vmem:[%s3 + $0xe8] sm:$0xff] %vm110, %v685
  %718 = vst.msk [vmem:[%s3 + $0xf0] sm:$0xff] %vm110, %v686
  %719 = vst.msk [vmem:[%s3 + $0xf8] sm:$0xff] %vm110, %v687
  // Predicated region
  $region14: #{tpu_custom_call.1} parent=0 // pred_check
    _
  $region15: #{tpu_custom_call.1} parent=0 // pred_check_branch
    %721 = sbr.rel (0) target = $region17
  $region16: #{tpu_custom_call.1} parent=0 // pred_region
    _
  $region17: #{tpu_custom_call.1} parent=0 // pred_fallthru
    _
  // Predicated region
  $region18: #{tpu_custom_call.1} parent=0 // pred_check
    _
  $region19: #{tpu_custom_call.1} parent=0 // pred_check_branch
    %723 = sbr.rel (0) target = $region21
  $region20: #{tpu_custom_call.1} parent=0 // pred_region
    _
  $region21: #{tpu_custom_call.1} parent=0 // pred_fallthru
    _

</llo_original>
